<compile_context>
chip_gen: v7x
topology: tpu7x:2x2x1
jax: 0.10.0
libtpu: 0.0.40
codegen_flags: <defaults>
</compile_context>

<pallas_src>
import functools

import jax
import jax.numpy as jnp
from jax.experimental import pallas as pl
from jax.experimental.pallas import tpu as pltpu


LANE = 128        # lane width
SUBLANE = 8       # f32 sublane tile
IN_DIM = 2        # fc1 in_features
IN_PAD = 8        # fc1 input padded to 8 cols -> clean f32 MXU matmul (K=8)
TB_MAX = 8192     # max batch rows per grid step (VMEM-safe on v5e/v6e/v7x)
VMEM_LIMIT = 48 << 20   # < 64 MiB physical on v7x; plenty of headroom elsewhere


def _mlp_kernel(x_ref, w1_ref, w23_ref, b_ref, o_ref):
    # x_ref:   (TB, 8)       f32   (cols 2..7 are zero)
    # w1_ref:  (8, 128)      f32   (rows 2..7 and cols 20..127 are zero)
    # w23_ref: (2, 128, 128) bf16  (fc2, fc3; padded rows/cols zero)
    # b_ref:   (3, 1, 128)   f32   (padded lanes zero)
    # o_ref:   (TB, out_dim) f32
    x = x_ref[...]                                              # (TB, 8) f32

    # Layer 1 on the MXU (f32, K=8): no per-column lane broadcasts on VPU/XLU.
    h1 = jnp.dot(x, w1_ref[...],
                 preferred_element_type=jnp.float32) + b_ref[0]
    h1 = jnp.maximum(h1, 0.0)                                   # (TB, 128) f32

    # Layer 2: bf16 MXU matmul, f32 accumulation.
    h2 = jnp.dot(h1.astype(jnp.bfloat16), w23_ref[0],
                 preferred_element_type=jnp.float32) + b_ref[1]
    h2 = jnp.maximum(h2, 0.0)

    # Layer 3: logits, no activation.
    h3 = jnp.dot(h2.astype(jnp.bfloat16), w23_ref[1],
                 preferred_element_type=jnp.float32) + b_ref[2]

    # Narrow (out_dim-wide) store: same vreg/VMEM cost as a 128-lane block,
    # 64x less HBM write traffic.
    o_ref[...] = h3[:, : o_ref.shape[1]].astype(o_ref.dtype)


def _pad2d(a, rows, cols):
    r, c = a.shape
    return jnp.pad(a, ((0, rows - r), (0, cols - c)))


def _ceil_to(n, m):
    return ((n + m - 1) // m) * m


def _choose_tiling(batch, tb_max):
    """Even (>=2) grid steps, tb multiple of 8, padding <= ~8*n_steps rows."""
    tb_max = max(SUBLANE, _ceil_to(tb_max, SUBLANE))
    n_steps = 2 * max(1, -(-batch // (2 * tb_max)))     # even, >= 2
    tb = _ceil_to(-(-batch // n_steps), SUBLANE)        # <= tb_max by construction
    bp = n_steps * tb
    return tb, n_steps, bp


def pack_params(params):
    """One-time packing of PyTorch-style params (w{i}: [in,out], b{i}: [out]).

    Call this ONCE outside the hot path; pass the result to the forward.
    Layer 1 stays f32 (exact); layers 2/3 are bf16 for the MXU."""
    w1 = _pad2d(params["w1"].astype(jnp.float32), IN_PAD, LANE)          # (8,128) f32
    w23 = jnp.stack([
        _pad2d(params["w2"], LANE, LANE),
        _pad2d(params["w3"], LANE, LANE),
    ]).astype(jnp.bfloat16)                                              # (2,128,128) bf16
    b = jnp.stack([
        _pad2d(params[f"b{i}"].reshape(1, -1).astype(jnp.float32), 1, LANE)
        for i in (1, 2, 3)
    ])                                                                   # (3,1,128) f32
    return {"w1": w1, "w23": w23, "b": b}


@functools.partial(jax.jit, static_argnames=("out_dim", "tb_max"))
def fc_net_laplace_forward(x, packed, out_dim, tb_max=TB_MAX):
    """x: [batch, 2] float32; packed: output of pack_params()."""
    batch = x.shape[0]
    tb, n_steps, bp = _choose_tiling(batch, tb_max)

    # Single pad op: rows -> bp (ragged tail), cols 2 -> 8 (zero columns make
    # the layer-1 MXU matmul exact).  Still 16x less traffic than a 128-lane slab.
    xp = jnp.pad(x.astype(jnp.float32),
                 ((0, bp - batch), (0, IN_PAD - IN_DIM)))

    out = pl.pallas_call(
        _mlp_kernel,
        out_shape=jax.ShapeDtypeStruct((bp, out_dim), jnp.float32),
        grid=(n_steps,),
        in_specs=[
            pl.BlockSpec((tb, IN_PAD), lambda i: (i, 0)),          # x tile
            pl.BlockSpec((IN_PAD, LANE), lambda i: (0, 0)),        # fc1 W (resident)
            pl.BlockSpec((2, LANE, LANE), lambda i: (0, 0, 0)),    # fc2/fc3 W (resident)
            pl.BlockSpec((3, 1, LANE), lambda i: (0, 0, 0)),       # biases (resident)
        ],
        out_specs=pl.BlockSpec((tb, out_dim), lambda i: (i, 0)),
        compiler_params=pltpu.CompilerParams(
            # TODO(synk): if a v7x trace shows "parallel" not splitting across
            # the two TensorCores, switch to pltpu.CORE_PARALLEL.
            dimension_semantics=("parallel",),
            vmem_limit_bytes=VMEM_LIMIT,
        ),
    )(xp, packed["w1"], packed["w23"], packed["b"])

    return out[:batch]


def init_params(key, out_dim):
    """Deterministic init mimicking PyTorch nn.Linear (uniform +/- 1/sqrt(fan_in)).
    Weights stored as [in_features, out_features]."""
    dims = [(2, 20), (20, 20), (20, out_dim)]
    params = {}
    for i, (fan_in, fan_out) in enumerate(dims, start=1):
        key, kw, kb = jax.random.split(key, 3)
        bound = 1.0 / jnp.sqrt(jnp.float32(fan_in))
        params[f"w{i}"] = jax.random.uniform(
            kw, (fan_in, fan_out), jnp.float32, -bound, bound)
        params[f"b{i}"] = jax.random.uniform(
            kb, (fan_out,), jnp.float32, -bound, bound)
    return params


def reference_forward(x, params):
    h1 = jnp.maximum(x @ params["w1"] + params["b1"], 0.0)
    h2 = jnp.maximum(h1 @ params["w2"] + params["b2"], 0.0)
    return h2 @ params["w3"] + params["b3"]


if __name__ == "__main__":
    out_dim = 2          # two_moons classification -> 2 logits

    key = jax.random.PRNGKey(0)
    key, kx = jax.random.split(key)
    params = init_params(key, out_dim)
    packed = pack_params(params)          # hoisted out of the per-call path

    # Small demo batch (two tiny grid steps).
    x_small = jax.random.normal(kx, (8, 2), jnp.float32)
    y_small = jax.block_until_ready(
        fc_net_laplace_forward(x_small, packed, out_dim))
    assert y_small.shape == (8, out_dim)
    ref_small = reference_forward(x_small, params)
    # Layers 2/3 use bf16 weights on the MXU -> modest tolerance.
    assert jnp.allclose(y_small, ref_small, atol=5e-2, rtol=5e-2), "mismatch (small)"

    # Exercise the multi-tile grid path (ragged batch, even number of steps).
    key, kx2 = jax.random.split(key)
    x_multi = jax.random.normal(kx2, (40, 2), jnp.float32)
    y_multi = jax.block_until_ready(
        fc_net_laplace_forward(x_multi, packed, out_dim, tb_max=16))
    assert y_multi.shape == (40, out_dim)
    ref_multi = reference_forward(x_multi, params)
    assert jnp.allclose(y_multi, ref_multi, atol=5e-2, rtol=5e-2), "mismatch (tiled)"

    print("KERNEL_OK")
</pallas_src>

<mosaic_0001>
module attributes {stable_mosaic.version = 11 : i64} {
  func.func @_mlp_kernel(%arg0: i32, %arg1: memref<8x8xf32, #tpu.memory_space<vmem>>, %arg2: memref<8x128xf32, #tpu.memory_space<vmem>>, %arg3: memref<2x128x128xbf16, #tpu.memory_space<vmem>>, %arg4: memref<3x1x128xf32, #tpu.memory_space<vmem>>, %arg5: memref<8x2xf32, #tpu.memory_space<vmem>>) attributes {dimension_semantics = [#tpu.dimension_semantics<parallel>], iteration_bounds = array<i64: 2>, scalar_prefetch = 0 : i64, scratch_operands = 0 : i64, tpu.core_type = #tpu.core_type<tc>, window_params = [{transform_indices = @transform_0, window_bounds = array<i64: 8, 8>}, {pipeline_mode = #tpu.pipeline_mode<synchronous>, transform_indices = @transform_1, window_bounds = array<i64: 8, 128>}, {pipeline_mode = #tpu.pipeline_mode<synchronous>, transform_indices = @transform_2, window_bounds = array<i64: 2, 128, 128>}, {pipeline_mode = #tpu.pipeline_mode<synchronous>, transform_indices = @transform_3, window_bounds = array<i64: 3, 1, 128>}, {transform_indices = @transform_4, window_bounds = array<i64: 8, 2>}]} {
    %c0 = arith.constant 0 : index
    %c0_0 = arith.constant 0 : index
    %0 = vector.load %arg1[%c0, %c0_0] : memref<8x8xf32, #tpu.memory_space<vmem>>, vector<8x8xf32>
    %c0_1 = arith.constant 0 : index
    %c0_2 = arith.constant 0 : index
    %1 = vector.load %arg2[%c0_1, %c0_2] : memref<8x128xf32, #tpu.memory_space<vmem>>, vector<8x128xf32>
    %cst = arith.constant dense<0.000000e+00> : vector<8x128xf32>
    %2 = tpu.matmul %0, %1, %cst {dimension_numbers = #tpu.dot_dimension_numbers<[1], [0], [0], [1], [0, 0, 1, 1], [], []>} : vector<8x8xf32>, vector<8x128xf32>, vector<8x128xf32> -> vector<8x128xf32>
    %c0_3 = arith.constant 0 : index
    %c0_4 = arith.constant 0 : index
    %c0_5 = arith.constant 0 : index
    %3 = vector.load %arg4[%c0_3, %c0_4, %c0_5] : memref<3x1x128xf32, #tpu.memory_space<vmem>>, vector<1x1x128xf32>
    %4 = vector.shape_cast %3 : vector<1x1x128xf32> to vector<1x128xf32>
    %5 = vector.broadcast %4 : vector<1x128xf32> to vector<8x128xf32>
    %6 = arith.addf %2, %5 : vector<8x128xf32>
    %cst_6 = arith.constant 0.000000e+00 : f32
    %7 = vector.broadcast %cst_6 : f32 to vector<8x128xf32>
    %8 = arith.maximumf %6, %7 : vector<8x128xf32>
    %9 = arith.truncf %8 : vector<8x128xf32> to vector<8x128xbf16>
    %c0_7 = arith.constant 0 : index
    %c0_8 = arith.constant 0 : index
    %c0_9 = arith.constant 0 : index
    %10 = vector.load %arg3[%c0_7, %c0_8, %c0_9] : memref<2x128x128xbf16, #tpu.memory_space<vmem>>, vector<1x128x128xbf16>
    %11 = vector.shape_cast %10 : vector<1x128x128xbf16> to vector<128x128xbf16>
    %cst_10 = arith.constant dense<0.000000e+00> : vector<8x128xf32>
    %12 = tpu.matmul %9, %11, %cst_10 {dimension_numbers = #tpu.dot_dimension_numbers<[1], [0], [0], [1], [0, 0, 1, 1], [], []>} : vector<8x128xbf16>, vector<128x128xbf16>, vector<8x128xf32> -> vector<8x128xf32>
    %c1 = arith.constant 1 : index
    %c0_11 = arith.constant 0 : index
    %c0_12 = arith.constant 0 : index
    %13 = vector.load %arg4[%c1, %c0_11, %c0_12] : memref<3x1x128xf32, #tpu.memory_space<vmem>>, vector<1x1x128xf32>
    %14 = vector.shape_cast %13 : vector<1x1x128xf32> to vector<1x128xf32>
    %15 = vector.broadcast %14 : vector<1x128xf32> to vector<8x128xf32>
    %16 = arith.addf %12, %15 : vector<8x128xf32>
    %cst_13 = arith.constant 0.000000e+00 : f32
    %17 = vector.broadcast %cst_13 : f32 to vector<8x128xf32>
    %18 = arith.maximumf %16, %17 : vector<8x128xf32>
    %19 = arith.truncf %18 : vector<8x128xf32> to vector<8x128xbf16>
    %c1_14 = arith.constant 1 : index
    %c0_15 = arith.constant 0 : index
    %c0_16 = arith.constant 0 : index
    %20 = vector.load %arg3[%c1_14, %c0_15, %c0_16] : memref<2x128x128xbf16, #tpu.memory_space<vmem>>, vector<1x128x128xbf16>
    %21 = vector.shape_cast %20 : vector<1x128x128xbf16> to vector<128x128xbf16>
    %cst_17 = arith.constant dense<0.000000e+00> : vector<8x128xf32>
    %22 = tpu.matmul %19, %21, %cst_17 {dimension_numbers = #tpu.dot_dimension_numbers<[1], [0], [0], [1], [0, 0, 1, 1], [], []>} : vector<8x128xbf16>, vector<128x128xbf16>, vector<8x128xf32> -> vector<8x128xf32>
    %c2 = arith.constant 2 : index
    %c0_18 = arith.constant 0 : index
    %c0_19 = arith.constant 0 : index
    %23 = vector.load %arg4[%c2, %c0_18, %c0_19] : memref<3x1x128xf32, #tpu.memory_space<vmem>>, vector<1x1x128xf32>
    %24 = vector.shape_cast %23 : vector<1x1x128xf32> to vector<1x128xf32>
    %25 = vector.broadcast %24 : vector<1x128xf32> to vector<8x128xf32>
    %26 = arith.addf %22, %25 : vector<8x128xf32>
    %27 = vector.extract_strided_slice %26 {offsets = [0, 0], sizes = [8, 2], strides = [1, 1]} : vector<8x128xf32> to vector<8x2xf32>
    %c0_20 = arith.constant 0 : index
    %c0_21 = arith.constant 0 : index
    %28 = vector.load %arg5[%c0_20, %c0_21] : memref<8x2xf32, #tpu.memory_space<vmem>>, vector<8x2xf32>
    tpu.vector_store %arg5[%c0_20, %c0_21], %27 {strides = array<i32>} : memref<8x2xf32, #tpu.memory_space<vmem>>, vector<8x2xf32>,
    return
  }
  func.func @transform_0(%arg0: i32) -> (i32, i32) {
    %c0_i32 = arith.constant 0 : i32
    %c0_i32_0 = arith.constant 0 : i32
    return %arg0, %c0_i32 : i32, i32
  }
  func.func @transform_1(%arg0: i32) -> (i32, i32) {
    %c0_i32 = arith.constant 0 : i32
    %c0_i32_0 = arith.constant 0 : i32
    %c0_i32_1 = arith.constant 0 : i32
    return %c0_i32, %c0_i32_0 : i32, i32
  }
  func.func @transform_2(%arg0: i32) -> (i32, i32, i32) {
    %c0_i32 = arith.constant 0 : i32
    %c0_i32_0 = arith.constant 0 : i32
    %c0_i32_1 = arith.constant 0 : i32
    %c0_i32_2 = arith.constant 0 : i32
    return %c0_i32, %c0_i32_0, %c0_i32_1 : i32, i32, i32
  }
  func.func @transform_3(%arg0: i32) -> (i32, i32, i32) {
    %c0_i32 = arith.constant 0 : i32
    %c0_i32_0 = arith.constant 0 : i32
    %c0_i32_1 = arith.constant 0 : i32
    %c0_i32_2 = arith.constant 0 : i32
    return %c0_i32, %c0_i32_0, %c0_i32_1 : i32, i32, i32
  }
  func.func @transform_4(%arg0: i32) -> (i32, i32) {
    %c0_i32 = arith.constant 0 : i32
    %c0_i32_0 = arith.constant 0 : i32
    return %arg0, %c0_i32 : i32, i32
  }
}

</mosaic_0001>

<llo_original>
// kernel: fc_net_laplace_forward.1
$region0: #{fc_net_laplace_forward.1}
  #allocation0 [shape = 'u32[]', space=smem, size = 0x4, offset = 0x4, fixed_abs, tag = 'smem constant byte address 0x4 - core index']
  #allocation1 [shape = 'u32[144,128]{1,0:T(1,128)}', space=vmem, size = 0x12000, scoped, tag = 'internal scratch']
  %s0 = inlined_call_operand.vmem [shape: f32[16,8], index: 0, kind: input, shape index: {}]
  %s1 = inlined_call_operand.vmem [shape: f32[8,128], index: 1, kind: input, shape index: {}]
  %s2 = inlined_call_operand.hbm [shape: bf16[2,128,128], index: 2, kind: input, shape index: {}]
  %s3 = inlined_call_operand.vmem [shape: f32[3,1,128], index: 3, kind: input, shape index: {}]
  %s4 = inlined_call_operand.vmem [shape: f32[16,2], index: 4, kind: output, shape index: {}]
  %s5 = sld [smem:[#allocation0]]
  $region53: #{fc_net_laplace_forward.1} parent=0
    _
  %s7 = ssub.s32 1, %s5
  %s8 = scalar_select 0, %s7, %s5
  $region1: #{fc_net_laplace_forward.1} parent=0
    #allocation2 [shape = 'u8[65536]{0}', space=vmem, size = 0x10000, scoped, tag = 'input window, operand 2, single buffered']
    #allocation3 [shape = 's32[2]{0}', space=sflag, size = 0x8, scoped, tag = 'scoped memory for fc_net_laplace_forward.1']
    %9 = vsyncpa [#allocation3], 0
    loop: start=0, step=1, limit=4
    $region2: #{fc_net_laplace_forward.1} parent=1 // loop_pre_header
      _
    $region3: #{fc_net_laplace_forward.1} parent=1 // loop_header
      %s11 = sphi 0, %s15
      %p12 = scmp.ge.s32.totalorder %s11, 4
      %s21 = sphi 0, %s23
      %s24 = sphi 0, %s21
      %s25 = sphi 0, %s24
      %s41 = sphi 0, %s25
      %s45 = sphi 0, %s45
      %s47 = sphi 0, %s45
      %s48 = sphi 0, %s47
      %s62 = sphi 0, %s48
      %s66 = sphi 0, %s66
      %s68 = sphi 0, %s66
      %s69 = sphi 0, %s68
      %s83 = sphi 0, %s69
      %s87 = sphi 0, %s87
      %s89 = sphi 0, %s87
      %s90 = sphi 0, %s89
      %s104 = sphi 0, %s90
      %s110 = sphi 0, %s112
      %s113 = sphi 0, %s110
      %s114 = sphi 0, %s113
      %s130 = sphi 0, %s114
    $region4: #{fc_net_laplace_forward.1} parent=1 // loop_header_branch
      %14 = sbr.rel (%p12) target = $region8
    $region5: #{fc_net_laplace_forward.1} parent=1 // loop_body
      %s16 = ssub.s32 %s11, 1
      %s17 = ssub.s32 %s11, 2
      %s18 = sadd.s32 %s11, 1
      %s19 = ssub.s32 %s11, %s18
      %p20 = scmp.eq.s32.totalorder %s19, 0
      %s22 = sadd.s32 %s21, 1
      %s23 = scalar_select %p20, %s21, %s22
      %p26 = pneg %p20
      %p27 = scmp.eq.s32.totalorder %s11, 1
      %p28 = por %p26, %p27
      %p29 = scmp.ne.s32.totalorder %s21, %s24
      %p30 = scmp.eq.s32.totalorder %s11, 0
      %p31 = por %p29, %p30
      %p32 = scmp.ne.s32.totalorder %s21, %s24
      %p33 = scmp.eq.s32.totalorder %s16, 1
      %p34 = por %p32, %p33
      %p35 = scmp.ne.s32.totalorder %s24, %s25
      %p36 = scmp.eq.s32.totalorder %s16, 0
      %p37 = por %p35, %p36
      %p38 = scmp.ne.s32.totalorder %s24, %s25
      %p39 = scmp.eq.s32.totalorder %s17, 1
      %p40 = por %p38, %p39
      %p42 = scmp.ne.s32.totalorder %s25, %s41
      %p43 = scmp.eq.s32.totalorder %s17, 0
      %p44 = por %p42, %p43
      %s46 = sadd.s32 %s45, 1
      %p49 = scmp.eq.s32.totalorder %s11, 1
      %p50 = scmp.ne.s32.totalorder %s45, %s47
      %p51 = scmp.eq.s32.totalorder %s11, 0
      %p52 = por %p50, %p51
      %p53 = scmp.ne.s32.totalorder %s45, %s47
      %p54 = scmp.eq.s32.totalorder %s16, 1
      %p55 = por %p53, %p54
      %p56 = scmp.ne.s32.totalorder %s47, %s48
      %p57 = scmp.eq.s32.totalorder %s16, 0
      %p58 = por %p56, %p57
      %p59 = scmp.ne.s32.totalorder %s47, %s48
      %p60 = scmp.eq.s32.totalorder %s17, 1
      %p61 = por %p59, %p60
      %p63 = scmp.ne.s32.totalorder %s48, %s62
      %p64 = scmp.eq.s32.totalorder %s17, 0
      %p65 = por %p63, %p64
      %s67 = sadd.s32 %s66, 1
      %p70 = scmp.eq.s32.totalorder %s11, 1
      %p71 = scmp.ne.s32.totalorder %s66, %s68
      %p72 = scmp.eq.s32.totalorder %s11, 0
      %p73 = por %p71, %p72
      %p74 = scmp.ne.s32.totalorder %s66, %s68
      %p75 = scmp.eq.s32.totalorder %s16, 1
      %p76 = por %p74, %p75
      %p77 = scmp.ne.s32.totalorder %s68, %s69
      %p78 = scmp.eq.s32.totalorder %s16, 0
      %p79 = por %p77, %p78
      %p80 = scmp.ne.s32.totalorder %s68, %s69
      %p81 = scmp.eq.s32.totalorder %s17, 1
      %p82 = por %p80, %p81
      %p84 = scmp.ne.s32.totalorder %s69, %s83
      %p85 = scmp.eq.s32.totalorder %s17, 0
      %p86 = por %p84, %p85
      %s88 = sadd.s32 %s87, 1
      %p91 = scmp.eq.s32.totalorder %s11, 1
      %p92 = scmp.ne.s32.totalorder %s87, %s89
      %p93 = scmp.eq.s32.totalorder %s11, 0
      %p94 = por %p92, %p93
      %p95 = scmp.ne.s32.totalorder %s87, %s89
      %p96 = scmp.eq.s32.totalorder %s16, 1
      %p97 = por %p95, %p96
      %p98 = scmp.ne.s32.totalorder %s89, %s90
      %p99 = scmp.eq.s32.totalorder %s16, 0
      %p100 = por %p98, %p99
      %p101 = scmp.ne.s32.totalorder %s89, %s90
      %p102 = scmp.eq.s32.totalorder %s17, 1
      %p103 = por %p101, %p102
      %p105 = scmp.ne.s32.totalorder %s90, %s104
      %p106 = scmp.eq.s32.totalorder %s17, 0
      %p107 = por %p105, %p106
      %s108 = ssub.s32 %s11, %s18
      %p109 = scmp.eq.s32.totalorder %s108, 0
      %s111 = sadd.s32 %s110, 1
      %s112 = scalar_select %p109, %s110, %s111
      %p115 = pneg %p109
      %p116 = scmp.eq.s32.totalorder %s11, 1
      %p117 = por %p115, %p116
      %p118 = scmp.ne.s32.totalorder %s110, %s113
      %p119 = scmp.eq.s32.totalorder %s11, 0
      %p120 = por %p118, %p119
      %p121 = scmp.ne.s32.totalorder %s110, %s113
      %p122 = scmp.eq.s32.totalorder %s16, 1
      %p123 = por %p121, %p122
      %p124 = scmp.ne.s32.totalorder %s113, %s114
      %p125 = scmp.eq.s32.totalorder %s16, 0
      %p126 = por %p124, %p125
      %p127 = scmp.ne.s32.totalorder %s113, %s114
      %p128 = scmp.eq.s32.totalorder %s17, 1
      %p129 = por %p127, %p128
      %p131 = scmp.ne.s32.totalorder %s114, %s130
      %p132 = scmp.eq.s32.totalorder %s17, 0
      %p133 = por %p131, %p132
      %p134 = scmp.le.s32.totalorder 1, %s11
      %p135 = scmp.lt.s32.totalorder %s11, 3
      %p136 = pnand %p134, %p135
      %p137 = pneg %p136
      // Predicated region
      $region9: #{fc_net_laplace_forward.1} parent=5 // pred_check
        _
      $region10: #{fc_net_laplace_forward.1} parent=5 // pred_check_branch
        %139 = sbr.rel (%p136) target = $region12
      $region11: #{fc_net_laplace_forward.1} parent=5 // pred_region
        %s140 = ssub.s32 %s11, 1
        // Predicated region
        $region13: #{fc_net_laplace_forward.1} parent=11 // pred_check
          %p141 = pneg %p58
        $region14: #{fc_net_laplace_forward.1} parent=11 // pred_check_branch
          %143 = sbr.rel (%p141) target = $region16
        $region15: #{fc_net_laplace_forward.1} parent=11 // pred_region
          _
        $region16: #{fc_net_laplace_forward.1} parent=11 // pred_fallthru
          _
        // Predicated region
        $region17: #{fc_net_laplace_forward.1} parent=11 // pred_check
          %p144 = pneg %p79
        $region18: #{fc_net_laplace_forward.1} parent=11 // pred_check_branch
          %146 = sbr.rel (%p144) target = $region20
        $region19: #{fc_net_laplace_forward.1} parent=11 // pred_region
          %s148 = ssub.s32 2048, 2048
          %149 = vsyncadd [#allocation3], %s148
          %s150 = sshll.u32 [#allocation2], 4
          %s151 = int_to_ptr.vmem [resolvable:$true] %s150
          %156 = dma.hbm_to_vmem [thread:$0]  %s2, 2048, %s151, [#allocation3], 64, 64, 4
        $region20: #{fc_net_laplace_forward.1} parent=11 // pred_fallthru
          _
        // Predicated region
        $region21: #{fc_net_laplace_forward.1} parent=11 // pred_check
          %p157 = pneg %p100
        $region22: #{fc_net_laplace_forward.1} parent=11 // pred_check_branch
          %159 = sbr.rel (%p157) target = $region24
        $region23: #{fc_net_laplace_forward.1} parent=11 // pred_region
          _
        $region24: #{fc_net_laplace_forward.1} parent=11 // pred_fallthru
          _
      $region12: #{fc_net_laplace_forward.1} parent=5 // pred_fallthru
        _
      %p160 = scmp.lt.s32.totalorder %s11, 2
      // Predicated region
      $region25: #{fc_net_laplace_forward.1} parent=5 // pred_check
        %p161 = pneg %p160
      $region26: #{fc_net_laplace_forward.1} parent=5 // pred_check_branch
        %163 = sbr.rel (%p161) target = $region28
      $region27: #{fc_net_laplace_forward.1} parent=5 // pred_region
        // Predicated region
        $region29: #{fc_net_laplace_forward.1} parent=27 // pred_check
          %p164 = pneg %p31
        $region30: #{fc_net_laplace_forward.1} parent=27 // pred_check_branch
          %166 = sbr.rel (%p164) target = $region32
        $region31: #{fc_net_laplace_forward.1} parent=27 // pred_region
          %p167 = scmp.lt.s32.totalorder %s11, 1
          %s168 = scalar_select %p167, %s11, 1
          %s169 = smul.addr %s168, 8
          %s170 = scalar_lea.vmem %s0, %s169
        $region32: #{fc_net_laplace_forward.1} parent=27 // pred_fallthru
          _
      $region28: #{fc_net_laplace_forward.1} parent=5 // pred_fallthru
        _
      %p171 = scmp.le.s32.totalorder 1, %s11
      %p172 = scmp.lt.s32.totalorder %s11, 3
      %p173 = pnand %p171, %p172
      %p174 = pneg %p173
      // Predicated region
      $region33: #{fc_net_laplace_forward.1} parent=5 // pred_check
        _
      $region34: #{fc_net_laplace_forward.1} parent=5 // pred_check_branch
        %176 = sbr.rel (%p173) target = $region36
      $region35: #{fc_net_laplace_forward.1} parent=5 // pred_region
        %s177 = ssub.s32 %s11, 1
        // Predicated region
        $region37: #{fc_net_laplace_forward.1} parent=35 // pred_check
          %p178 = pneg %p79
        $region38: #{fc_net_laplace_forward.1} parent=35 // pred_check_branch
          %180 = sbr.rel (%p178) target = $region40
        $region39: #{fc_net_laplace_forward.1} parent=35 // pred_region
          %181 = dma.done [#allocation3], 2048
        $region40: #{fc_net_laplace_forward.1} parent=35 // pred_fallthru
          _
        %p182 = scmp.lt.s32.totalorder %s16, 1
        %s183 = scalar_select %p182, %s16, 1
        %s184 = smul.addr %s183, 8
        %s185 = scalar_lea.vmem %s0, %s184
        %p186 = pneg %p37
        %p187 = pneg %p34
        %p188 = pneg %p58
        %p189 = pneg %p55
        %p190 = pneg %p79
        %p191 = pneg %p76
        %p192 = pneg %p100
        %p193 = pneg %p97
        %p194 = pneg %p126
        %p195 = pneg %p123
        %p196 = scmp.lt.s32.totalorder %s16, 1
        %s197 = scalar_select %p196, %s16, 1
        %s198 = smul.addr %s197, 8
        %s199 = scalar_lea.vmem %s4, %s198
        %p200 = scmp.lt.s32.totalorder %s16, 1
        %s201 = scalar_select %p200, %s16, 1
        %s202 = smul.addr %s201, 8
        %s203 = scalar_lea.vmem %s0, %s202
        %p204 = scmp.lt.s32.totalorder %s16, 1
        %s205 = scalar_select %p204, %s16, 1
        %s206 = smul.addr %s205, 8
        %s207 = scalar_lea.vmem %s4, %s206
        %v209 = vld [vmem:[%s203] sm:$0xff]
        %v210 = vld [vmem:[%s1] sm:$0xff]
        %v211 = vld [vmem:[%s3] sm:$0x1]
        %v213 = vlaneseq
        %v214 = vshrl.u32 %v213, 7
        %v215 = vsub.s32 0, %v214
        %v216 = vrot.slane %v211, %v215
        %vm218 = vcmask 64512
        %v220 = vsel %vm218, %v209, 0
        %222 = vmatprep.subr.mxu0 0.0
        %223 = vmatpush1.msra.mxu0 %v210
        %224 = vmatprep.subr.mxu0 0.0
        %225 = vmatpush1.msra.mxu0 0.0
        %226 = vmatprep.subr.mxu0 0.0
        %227 = vmatpush1.msra.mxu0 0.0
        %228 = vmatprep.subr.mxu0 0.0
        %229 = vmatpush1.msra.mxu0 0.0
        %230 = vmatprep.subr.mxu0 0.0
        %231 = vmatpush1.msra.mxu0 0.0
        %232 = vmatprep.subr.mxu0 0.0
        %233 = vmatpush1.msra.mxu0 0.0
        %234 = vmatprep.subr.mxu0 0.0
        %235 = vmatpush1.msra.mxu0 0.0
        %236 = vmatprep.subr.mxu0 0.0
        %237 = vmatpush1.msra.mxu0 0.0
        %238 = vmatprep.subr.mxu0 0.0
        %239 = vmatpush1.msra.mxu0 0.0
        %240 = vmatprep.subr.mxu0 0.0
        %241 = vmatpush1.msra.mxu0 0.0
        %242 = vmatprep.subr.mxu0 0.0
        %243 = vmatpush1.msra.mxu0 0.0
        %244 = vmatprep.subr.mxu0 0.0
        %245 = vmatpush1.msra.mxu0 0.0
        %246 = vmatprep.subr.mxu0 0.0
        %247 = vmatpush1.msra.mxu0 0.0
        %248 = vmatprep.subr.mxu0 0.0
        %249 = vmatpush1.msra.mxu0 0.0
        %250 = vmatprep.subr.mxu0 0.0
        %251 = vmatpush1.msra.mxu0 0.0
        %252 = vmatprep.subr.mxu0 0.0
        %253 = vmatpush1.msra.mxu0 0.0
        %254 = vmatprep.subr.mxu0 0.0
        %255 = vmatpush1.msra.mxu0 0.0
        %256 = vmatprep.subr.mxu0 0.0
        %257 = vmatpush1.msra.mxu0 0.0
        %258 = vmatprep.subr.mxu0 0.0
        %259 = vmatpush1.msra.mxu0 0.0
        %260 = vmatprep.subr.mxu0 0.0
        %261 = vmatpush1.msra.mxu0 0.0
        %262 = vmatprep.subr.mxu0 0.0
        %263 = vmatpush1.msra.mxu0 0.0
        %264 = vmatprep.subr.mxu0 0.0
        %265 = vmatpush1.msra.mxu0 0.0
        %266 = vmatprep.subr.mxu0 0.0
        %267 = vmatpush1.msra.mxu0 0.0
        %268 = vmatprep.subr.mxu0 0.0
        %269 = vmatpush1.msra.mxu0 0.0
        %270 = vmatprep.subr.mxu0 0.0
        %271 = vmatpush1.msra.mxu0 0.0
        %272 = vmatprep.subr.mxu0 0.0
        %273 = vmatpush1.msra.mxu0 0.0
        %274 = vmatprep.subr.mxu0 0.0
        %275 = vmatpush1.msra.mxu0 0.0
        %276 = vmatprep.subr.mxu0 0.0
        %277 = vmatpush1.msra.mxu0 0.0
        %278 = vmatprep.subr.mxu0 0.0
        %279 = vmatpush1.msra.mxu0 0.0
        %280 = vmatprep.subr.mxu0 0.0
        %281 = vmatpush1.msra.mxu0 0.0
        %282 = vmatprep.subr.mxu0 0.0
        %283 = vmatpush1.msra.mxu0 0.0
        %284 = vmatprep.subr.mxu0 0.0
        %285 = vmatpush1.msra.mxu0 0.0
        %286 = vmatprep.mubr.f32.mxu0 0.0
        %287 = vmatmul.mubr.f32.gmra.mrb[0].mxu0 %v220
        %v288 = vpop.f32.mrb[0].mxu0
        %v289 = vadd.f32 %v216, %v288
        %v290 = vpop.f32.mrb[0].mxu0
        %291 = vdwg.mxu0
        %v292 = vmax.f32 %v289, 0.0
        %v293 = vpack.c.bf16 %v292, %v292
        %v294 = vld [vmem:[#allocation2] sm:$0xf]
        %v295 = vld [vmem:[#allocation2 + $0x4] sm:$0xf]
        %v296 = vld [vmem:[#allocation2 + $0x8] sm:$0xf]
        %v297 = vld [vmem:[#allocation2 + $0xc] sm:$0xf]
        %v298 = vld [vmem:[#allocation2 + $0x10] sm:$0xf]
        %v299 = vld [vmem:[#allocation2 + $0x14] sm:$0xf]
        %v300 = vld [vmem:[#allocation2 + $0x18] sm:$0xf]
        %v301 = vld [vmem:[#allocation2 + $0x1c] sm:$0xf]
        %v302 = vld [vmem:[#allocation2 + $0x20] sm:$0xf]
        %v303 = vld [vmem:[#allocation2 + $0x24] sm:$0xf]
        %v304 = vld [vmem:[#allocation2 + $0x28] sm:$0xf]
        %v305 = vld [vmem:[#allocation2 + $0x2c] sm:$0xf]
        %v306 = vld [vmem:[#allocation2 + $0x30] sm:$0xf]
        %v307 = vld [vmem:[#allocation2 + $0x34] sm:$0xf]
        %v308 = vld [vmem:[#allocation2 + $0x38] sm:$0xf]
        %v309 = vld [vmem:[#allocation2 + $0x3c] sm:$0xf]
        %s310 = scalar_lea.vmem %s3, 1
        %v311 = vld [vmem:[%s310] sm:$0x1]
        %v313 = vlaneseq
        %v314 = vshrl.u32 %v313, 7
        %v315 = vsub.s32 0, %v314
        %v316 = vrot.slane %v311, %v315
        %v334 = vunpack.c.l.b16 %v294
        %v335 = vunpack.c.l.b16 %v295
        %v336 = vunpack.c.l.b16 %v296
        %v337 = vunpack.c.l.b16 %v297
        %v338 = vunpack.c.l.b16 %v298
        %v339 = vunpack.c.l.b16 %v299
        %v340 = vunpack.c.l.b16 %v300
        %v341 = vunpack.c.l.b16 %v301
        %v342 = vunpack.c.l.b16 %v302
        %v343 = vunpack.c.l.b16 %v303
        %v344 = vunpack.c.l.b16 %v304
        %v345 = vunpack.c.l.b16 %v305
        %v346 = vunpack.c.l.b16 %v306
        %v347 = vunpack.c.l.b16 %v307
        %v348 = vunpack.c.l.b16 %v308
        %v349 = vunpack.c.l.b16 %v309
        %v350 = vpack.c.b16 %v335, %v334
        %v351 = vpack.c.b16 %v337, %v336
        %v352 = vpack.c.b16 %v339, %v338
        %v353 = vpack.c.b16 %v341, %v340
        %v354 = vpack.c.b16 %v343, %v342
        %v355 = vpack.c.b16 %v345, %v344
        %v356 = vpack.c.b16 %v347, %v346
        %v357 = vpack.c.b16 %v349, %v348
        %366 = vmatprep.subr.bf16.mxu0 0
        %367 = vmatpush1.bf16.msra.mxu0 %v350
        %368 = vmatprep.subr.bf16.mxu0 0
        %369 = vmatpush1.bf16.msra.mxu0 %v351
        %370 = vmatprep.subr.bf16.mxu0 0
        %371 = vmatpush1.bf16.msra.mxu0 %v352
        %372 = vmatprep.subr.bf16.mxu0 0
        %373 = vmatpush1.bf16.msra.mxu0 %v353
        %374 = vmatprep.subr.bf16.mxu0 0
        %375 = vmatpush1.bf16.msra.mxu0 %v354
        %376 = vmatprep.subr.bf16.mxu0 0
        %377 = vmatpush1.bf16.msra.mxu0 %v355
        %378 = vmatprep.subr.bf16.mxu0 0
        %379 = vmatpush1.bf16.msra.mxu0 %v356
        %380 = vmatprep.subr.bf16.mxu0 0
        %381 = vmatpush1.bf16.msra.mxu0 %v357
        %382 = vmatprep.subr.bf16.mxu0 0
        %383 = vmatpush1.bf16.msra.mxu0 0
        %384 = vmatprep.subr.bf16.mxu0 0
        %385 = vmatpush1.bf16.msra.mxu0 0
        %386 = vmatprep.subr.bf16.mxu0 0
        %387 = vmatpush1.bf16.msra.mxu0 0
        %388 = vmatprep.subr.bf16.mxu0 0
        %389 = vmatpush1.bf16.msra.mxu0 0
        %390 = vmatprep.subr.bf16.mxu0 0
        %391 = vmatpush1.bf16.msra.mxu0 0
        %392 = vmatprep.subr.bf16.mxu0 0
        %393 = vmatpush1.bf16.msra.mxu0 0
        %394 = vmatprep.subr.bf16.mxu0 0
        %395 = vmatpush1.bf16.msra.mxu0 0
        %396 = vmatprep.subr.bf16.mxu0 0
        %397 = vmatpush1.bf16.msra.mxu0 0
        %398 = vmatprep.mubr.bf16.mxu0 0
        %399 = vmatmul.mubr.bf16.gmra.mrb[0].mxu0 %v293
        %v400 = vpop.f32.mrb[0].mxu0
        %v401 = vadd.f32 %v316, %v400
        %v402 = vpop.f32.mrb[0].mxu0
        %v403 = vpop.f32.mrb[0].mxu0
        %v404 = vpop.f32.mrb[0].mxu0
        %405 = vdwg.mxu0
        %v406 = vmax.f32 %v401, 0.0
        %v407 = vpack.c.bf16 %v406, %v406
        %s408 = scalar_lea.vmem [#allocation2], 64
        %v409 = vld [vmem:[%s408] sm:$0xf]
        %v410 = vld [vmem:[%s408 + $0x4] sm:$0xf]
        %v411 = vld [vmem:[%s408 + $0x8] sm:$0xf]
        %v412 = vld [vmem:[%s408 + $0xc] sm:$0xf]
        %v413 = vld [vmem:[%s408 + $0x10] sm:$0xf]
        %v414 = vld [vmem:[%s408 + $0x14] sm:$0xf]
        %v415 = vld [vmem:[%s408 + $0x18] sm:$0xf]
        %v416 = vld [vmem:[%s408 + $0x1c] sm:$0xf]
        %v417 = vld [vmem:[%s408 + $0x20] sm:$0xf]
        %v418 = vld [vmem:[%s408 + $0x24] sm:$0xf]
        %v419 = vld [vmem:[%s408 + $0x28] sm:$0xf]
        %v420 = vld [vmem:[%s408 + $0x2c] sm:$0xf]
        %v421 = vld [vmem:[%s408 + $0x30] sm:$0xf]
        %v422 = vld [vmem:[%s408 + $0x34] sm:$0xf]
        %v423 = vld [vmem:[%s408 + $0x38] sm:$0xf]
        %v424 = vld [vmem:[%s408 + $0x3c] sm:$0xf]
        %s425 = scalar_lea.vmem %s3, 2
        %v426 = vld [vmem:[%s425] sm:$0x1]
        %v428 = vlaneseq
        %v429 = vshrl.u32 %v428, 7
        %v430 = vsub.s32 0, %v429
        %v431 = vrot.slane %v426, %v430
        %v449 = vunpack.c.l.b16 %v409
        %v450 = vunpack.c.l.b16 %v410
        %v451 = vunpack.c.l.b16 %v411
        %v452 = vunpack.c.l.b16 %v412
        %v453 = vunpack.c.l.b16 %v413
        %v454 = vunpack.c.l.b16 %v414
        %v455 = vunpack.c.l.b16 %v415
        %v456 = vunpack.c.l.b16 %v416
        %v457 = vunpack.c.l.b16 %v417
        %v458 = vunpack.c.l.b16 %v418
        %v459 = vunpack.c.l.b16 %v419
        %v460 = vunpack.c.l.b16 %v420
        %v461 = vunpack.c.l.b16 %v421
        %v462 = vunpack.c.l.b16 %v422
        %v463 = vunpack.c.l.b16 %v423
        %v464 = vunpack.c.l.b16 %v424
        %v465 = vpack.c.b16 %v450, %v449
        %v466 = vpack.c.b16 %v452, %v451
        %v467 = vpack.c.b16 %v454, %v453
        %v468 = vpack.c.b16 %v456, %v455
        %v469 = vpack.c.b16 %v458, %v457
        %v470 = vpack.c.b16 %v460, %v459
        %v471 = vpack.c.b16 %v462, %v461
        %v472 = vpack.c.b16 %v464, %v463
        %481 = vmatprep.subr.bf16.mxu0 0
        %482 = vmatpush1.bf16.msra.mxu0 %v465
        %483 = vmatprep.subr.bf16.mxu0 0
        %484 = vmatpush1.bf16.msra.mxu0 %v466
        %485 = vmatprep.subr.bf16.mxu0 0
        %486 = vmatpush1.bf16.msra.mxu0 %v467
        %487 = vmatprep.subr.bf16.mxu0 0
        %488 = vmatpush1.bf16.msra.mxu0 %v468
        %489 = vmatprep.subr.bf16.mxu0 0
        %490 = vmatpush1.bf16.msra.mxu0 %v469
        %491 = vmatprep.subr.bf16.mxu0 0
        %492 = vmatpush1.bf16.msra.mxu0 %v470
        %493 = vmatprep.subr.bf16.mxu0 0
        %494 = vmatpush1.bf16.msra.mxu0 %v471
        %495 = vmatprep.subr.bf16.mxu0 0
        %496 = vmatpush1.bf16.msra.mxu0 %v472
        %497 = vmatprep.subr.bf16.mxu0 0
        %498 = vmatpush1.bf16.msra.mxu0 0
        %499 = vmatprep.subr.bf16.mxu0 0
        %500 = vmatpush1.bf16.msra.mxu0 0
        %501 = vmatprep.subr.bf16.mxu0 0
        %502 = vmatpush1.bf16.msra.mxu0 0
        %503 = vmatprep.subr.bf16.mxu0 0
        %504 = vmatpush1.bf16.msra.mxu0 0
        %505 = vmatprep.subr.bf16.mxu0 0
        %506 = vmatpush1.bf16.msra.mxu0 0
        %507 = vmatprep.subr.bf16.mxu0 0
        %508 = vmatpush1.bf16.msra.mxu0 0
        %509 = vmatprep.subr.bf16.mxu0 0
        %510 = vmatpush1.bf16.msra.mxu0 0
        %511 = vmatprep.subr.bf16.mxu0 0
        %512 = vmatpush1.bf16.msra.mxu0 0
        %513 = vmatprep.mubr.bf16.mxu0 0
        %514 = vmatmul.mubr.bf16.gmra.mrb[0].mxu0 %v407
        %v515 = vpop.f32.mrb[0].mxu0
        %v516 = vadd.f32 %v431, %v515
        %v517 = vpop.f32.mrb[0].mxu0
        %v518 = vpop.f32.mrb[0].mxu0
        %v519 = vpop.f32.mrb[0].mxu0
        %520 = vdwg.mxu0
        %vm521 = vcmask 15360
        %522 = vst.msk [vmem:[%s207] sm:$0xff] %vm521, %v516
        %p523 = scmp.lt.s32.totalorder %s16, 1
        %s524 = scalar_select %p523, %s16, 1
        %s525 = smul.addr %s524, 8
        %s526 = scalar_lea.vmem %s4, %s525
        // Predicated region
        $region41: #{fc_net_laplace_forward.1} parent=35 // pred_check
          %p527 = pneg %p123
        $region42: #{fc_net_laplace_forward.1} parent=35 // pred_check_branch
          %529 = sbr.rel (%p527) target = $region44
        $region43: #{fc_net_laplace_forward.1} parent=35 // pred_region
          _
        $region44: #{fc_net_laplace_forward.1} parent=35 // pred_fallthru
          _
      $region36: #{fc_net_laplace_forward.1} parent=5 // pred_fallthru
        _
      %p530 = scmp.le.s32.totalorder 2, %s11
      // Predicated region
      $region45: #{fc_net_laplace_forward.1} parent=5 // pred_check
        %p531 = pneg %p530
      $region46: #{fc_net_laplace_forward.1} parent=5 // pred_check_branch
        %533 = sbr.rel (%p531) target = $region48
      $region47: #{fc_net_laplace_forward.1} parent=5 // pred_region
        %s534 = ssub.s32 %s11, 2
        // Predicated region
        $region49: #{fc_net_laplace_forward.1} parent=47 // pred_check
          %p535 = pneg %p129
        $region50: #{fc_net_laplace_forward.1} parent=47 // pred_check_branch
          %537 = sbr.rel (%p535) target = $region52
        $region51: #{fc_net_laplace_forward.1} parent=47 // pred_region
          %p538 = scmp.lt.s32.totalorder %s17, 1
          %s539 = scalar_select %p538, %s17, 1
          %s540 = smul.addr %s539, 8
          %s541 = scalar_lea.vmem %s4, %s540
        $region52: #{fc_net_laplace_forward.1} parent=47 // pred_fallthru
          _
      $region48: #{fc_net_laplace_forward.1} parent=5 // pred_fallthru
        _
    $region6: #{fc_net_laplace_forward.1} parent=1 // loop_footer
      %s15 = sadd.s32 1, %s11
    $region7: #{fc_net_laplace_forward.1} parent=1 // loop_footer_branch
      %10 = sbr.rel target = $region3
    $region8: #{fc_net_laplace_forward.1} parent=1 // loop_exit
      _
    %542 = vsyncpa [#allocation3], 1
    %s543 = scalar_lea.sflag [#allocation3], 1
    %544 = vsyncpa %s543, 1

</llo_original>
